<compile_context>
chip_gen: v7x
topology: tpu7x:2x2x1
jax: 0.10.0
libtpu: 0.0.40
codegen_flags: <defaults>
</compile_context>

<pallas_src>
import numpy as np
import jax
import jax.numpy as jnp
from jax.experimental import pallas as pl
from jax.experimental.pallas import tpu as pltpu


# ---------------------------------------------------------------------------
# Pallas kernel: for each sample in the block, y[k, v] = W @ x[:, v] + b
# (vertex axis stays on the 128-lane dimension -> lane-dense vld/vst)
# ---------------------------------------------------------------------------
def _upconv_linear_kernel(x_ref, w_ref, b_ref, o_ref):
    # x_ref: (nb, C_in, tv)  w_ref: (K, C_in)  b_ref: (K, 1)  o_ref: (nb, K, tv)
    w = w_ref[...]
    bias = b_ref[...]
    for i in range(x_ref.shape[0]):          # nb is a static block dim -> unrolled
        acc = jnp.dot(w, x_ref[i], preferred_element_type=jnp.float32)
        o_ref[i] = (acc + bias).astype(o_ref.dtype)


def _choose_tiles(n, v, c_in, k, cap_tile_v):
    """Pick (samples-per-block nb, vertex-tile tv).

    Large lane-aligned vertex tiles amortize the ~0.35us per-grid-step pipeline
    overhead; sample batching does the same for small meshes.  Keep >= 2 grid
    blocks whenever possible so v7x megacore can shard work across both TCs.
    """
    if v > cap_tile_v:
        return 1, (cap_tile_v // 128) * 128          # 128-aligned, cdiv handles tail
    tv = v                                           # full-dim block: always legal
    if n == 1:
        if v >= 256:
            tv = -(-((v + 1) // 2) // 128) * 128     # ~half of V so grid has 2 blocks
        return 1, tv
    # Batch samples into one block, bounded by a conservative VMEM budget and by
    # ceil(n/2) so the sample grid axis keeps at least two blocks.
    bytes_per_sample = (c_in + k) * tv * 4
    budget = 8 * 1024 * 1024
    nb = max(1, min(n, budget // max(bytes_per_sample, 1)))
    nb = min(nb, -(-n // 2))
    return nb, tv


def pallas_upconv_linear(x, w, b, *, cap_tile_v=8192):
    """Compute yT[n] = w @ x[n] + b with a Pallas TPU kernel.

    x: (N, C_in, V) f32 (native torch layout, no host-side transpose)
    w: (K, C_in)    f32 (K = neigh*C_out, rows may be pre-permuted by caller)
    b: (K,)         f32
    returns (N, K, V) f32

    cap_tile_v=8192 keeps ~1.1 MiB per block (K=28, f32): DMA time dominates the
    fixed per-step cost on every generation while staying far under VMEM limits.
    # TODO(synk): on v7x (3.2 TB/s HBM) a ~32K vertex tile is even better.
    """
    n, c_in, v = x.shape
    k = w.shape[0]
    nb, tv = _choose_tiles(n, v, c_in, k, cap_tile_v)
    grid = (pl.cdiv(n, nb), pl.cdiv(v, tv))
    b2d = b.reshape(k, 1)

    return pl.pallas_call(
        _upconv_linear_kernel,
        out_shape=jax.ShapeDtypeStruct((n, k, v), x.dtype),
        grid_spec=pltpu.PrefetchScalarGridSpec(
            num_scalar_prefetch=0,
            grid=grid,
            in_specs=[
                pl.BlockSpec((nb, c_in, tv), lambda i, j: (i, 0, j)),
                pl.BlockSpec((k, c_in), lambda i, j: (0, 0)),   # resident weight
                pl.BlockSpec((k, 1), lambda i, j: (0, 0)),      # resident bias
            ],
            out_specs=pl.BlockSpec((nb, k, tv), lambda i, j: (i, 0, j)),
        ),
        compiler_params=pltpu.CompilerParams(
            dimension_semantics=("parallel", "parallel")),
    )(x, w, b2d)


# ---------------------------------------------------------------------------
# IcoGenericUpConv re-implementation (index bookkeeping identical to torch)
# ---------------------------------------------------------------------------
class IcoGenericUpConvPallas:
    def __init__(self, in_feats, out_feats, up_neigh_indices, down_indices, keys):
        self.in_feats = in_feats
        self.out_feats = out_feats
        self.up_neigh_indices = np.asarray(up_neigh_indices)
        self.down_indices = np.asarray(down_indices)
        self.neigh_indices = self.up_neigh_indices[self.down_indices]   # (V_down, neigh)
        self.n_vertices, self.neigh_size = self.up_neigh_indices.shape
        v_down = self.neigh_indices.shape[0]

        flat = self.neigh_indices.reshape(-1)          # torch flat order p = v*neigh + j
        order = np.argsort(flat, kind="stable")
        sorted_flat = flat[order]
        assert np.unique(sorted_flat).tolist() == list(range(self.n_vertices))
        counts = np.bincount(flat, minlength=self.n_vertices)
        self.max_count = int(counts.max())

        # Contribution m of up-vertex u comes from torch flat position order[start_u+m];
        # remap it into the kernel-output layout (N, C_out, neigh*V_down) where, per
        # channel, the flat index is j*V_down + v (weight rows are (C_out, neigh)-major).
        gather_idx = np.zeros((self.max_count, self.n_vertices), dtype=np.int32)
        gather_w = np.zeros((self.max_count, self.n_vertices), dtype=np.float32)
        starts = np.concatenate([[0], np.cumsum(counts)])
        for u in range(self.n_vertices):
            c = int(counts[u])
            for m in range(c):
                p = int(order[starts[u] + m])
                v_idx, j_idx = divmod(p, self.neigh_size)
                gather_idx[m, u] = j_idx * v_down + v_idx
                gather_w[m, u] = 1.0 / c
        self.gather_idx = jnp.asarray(gather_idx)
        self.gather_w = jnp.asarray(gather_w)

        # nn.Linear(in_feats, neigh*out_feats): torch layout weight (K, C_in), bias (K,)
        k_w, k_b = keys
        k_dim = self.neigh_size * out_feats
        self.w = 0.1 * jax.random.normal(k_w, (k_dim, in_feats), dtype=jnp.float32)
        self.b = 0.1 * jax.random.normal(k_b, (k_dim,), dtype=jnp.float32)
        # Pre-permute rows from (neigh, C_out)-major to (C_out, neigh)-major so the
        # kernel output needs no post-kernel transpose (free at init).
        perm = np.arange(k_dim).reshape(self.neigh_size, out_feats).T.reshape(-1)
        self.w_perm = self.w[perm]
        self.b_perm = self.b[perm]

        # Dense averaging matrix (torch flattening p = v*neigh + j) for the pure-JAX
        # reference path only.
        p_total = flat.shape[0]
        avg = np.zeros((p_total, self.n_vertices), dtype=np.float32)
        avg[np.arange(p_total), flat] = 1.0 / counts[flat]
        self.avg_mat = jnp.asarray(avg)

    def __call__(self, x, *, cap_tile_v=8192):
        # x: (N, C_in, V_down)
        n_samples, _, v_down = x.shape
        y_t = pallas_upconv_linear(x, self.w_perm, self.b_perm,
                                   cap_tile_v=cap_tile_v)       # (N, K, V_down)
        # Rows are (C_out, neigh)-major, so this reshape is a pure row-major view:
        # (N, C_out*neigh, V) == (N, C_out, neigh*V).  No transpose, no extra HBM pass.
        y_flat = y_t.reshape(n_samples, self.out_feats, self.neigh_size * v_down)
        # Variable-count per-up-vertex mean as a max_count-way gather + weighted add
        # (counts are 1 or 2 on ico meshes) -- replaces the XLA scatter-add tail.
        # TODO(synk): could be fused into the Pallas epilogue with scalar-prefetched
        # indices to avoid materializing y_flat in HBM at all.
        out = jnp.take(y_flat, self.gather_idx[0], axis=-1) * self.gather_w[0]
        for m in range(1, self.max_count):
            out = out + jnp.take(y_flat, self.gather_idx[m], axis=-1) * self.gather_w[m]
        return out                                               # (N, C_out, V_up)

    def reference(self, x):
        """Pure-JAX reference mirroring the torch forward (correctness check)."""
        n_samples, n_feats, n_verts = x.shape
        x2d = jnp.transpose(x, (0, 2, 1)).reshape(n_samples * n_verts, n_feats)
        y = jnp.dot(x2d, self.w.T, precision=jax.lax.Precision.HIGHEST) + self.b
        y = y.reshape(n_samples, n_verts * self.neigh_size, self.out_feats)
        return jnp.einsum("npc,pu->ncu", y, self.avg_mat,
                          precision=jax.lax.Precision.HIGHEST)


# ---------------------------------------------------------------------------
# Synthetic icosahedron-like neighbor structure (no file / mesh dependency)
# ---------------------------------------------------------------------------
def make_synthetic_ico_indices(n_down=42, neigh_size=7, seed=0):
    """up_neigh_indices / down_indices with the icosahedron 1-ring pattern:
      - 12 pole vertices (ids 0..11)      : appear twice
      - n_down-12 old vertices            : appear once
      - n_up-n_down new mid-edge vertices : appear twice
    where n_up = 4 * n_down - 6."""
    n_up = 4 * n_down - 6
    vals = ([i for i in range(12) for _ in range(2)]
            + list(range(12, n_down))
            + [i for i in range(n_down, n_up) for _ in range(2)])
    vals = np.asarray(vals, dtype=np.int64)
    assert len(vals) == n_down * neigh_size
    rng = np.random.RandomState(seed)
    neigh = vals[rng.permutation(len(vals))].reshape(n_down, neigh_size)

    down_indices = np.arange(n_down, dtype=np.int64)
    up_neigh_indices = np.zeros((n_up, neigh_size), dtype=np.int64)
    up_neigh_indices[:n_down] = neigh
    up_neigh_indices[n_down:] = np.arange(n_down, n_up)[:, None]
    return up_neigh_indices, down_indices


if __name__ == "__main__":
    in_feats, out_feats = 8, 4
    key = jax.random.PRNGKey(0)

    configs = [
        # (n_down, n_samples, cap_tile_v)
        (42, 4, 8192),    # single full-V block, sample batching (nb=2)
        (162, 3, 8192),   # partial sample block (3 samples, nb=2, tail sample OOB)
        (642, 2, 256),    # lane-aligned 256-wide vertex tiles + ragged tail
    ]
    for n_down, n_samples, cap in configs:
        n_up = 4 * n_down - 6
        up_neigh, down_idx = make_synthetic_ico_indices(n_down=n_down)
        key, k_w, k_b, k_x = jax.random.split(key, 4)
        module = IcoGenericUpConvPallas(
            in_feats, out_feats, up_neigh, down_idx, (k_w, k_b))
        x = jax.random.normal(k_x, (n_samples, in_feats, n_down), dtype=jnp.float32)

        y = jax.block_until_ready(module(x, cap_tile_v=cap))
        y_ref = module.reference(x)

        assert y.shape == (n_samples, out_feats, n_up), y.shape
        err = float(jnp.max(jnp.abs(y - y_ref)))
        assert jnp.allclose(y, y_ref, atol=2e-3, rtol=2e-3), err

    print("KERNEL_OK")
</pallas_src>

<mosaic_0001>
module attributes {stable_mosaic.version = 11 : i64} {
  func.func @_upconv_linear_kernel(%arg0: i32, %arg1: i32, %arg2: memref<2x8x42xf32, #tpu.memory_space<vmem>>, %arg3: memref<28x8xf32, #tpu.memory_space<vmem>>, %arg4: memref<28x1xf32, #tpu.memory_space<vmem>>, %arg5: memref<2x28x42xf32, #tpu.memory_space<vmem>>) attributes {dimension_semantics = [#tpu.dimension_semantics<parallel>, #tpu.dimension_semantics<parallel>], iteration_bounds = array<i64: 2, 1>, scalar_prefetch = 0 : i64, scratch_operands = 0 : i64, tpu.core_type = #tpu.core_type<tc>, window_params = [{transform_indices = @transform_0, window_bounds = array<i64: 2, 8, 42>}, {pipeline_mode = #tpu.pipeline_mode<synchronous>, transform_indices = @transform_1, window_bounds = array<i64: 28, 8>}, {pipeline_mode = #tpu.pipeline_mode<synchronous>, transform_indices = @transform_2, window_bounds = array<i64: 28, 1>}, {transform_indices = @transform_3, window_bounds = array<i64: 2, 28, 42>}]} {
    %c0 = arith.constant 0 : index
    %c0_0 = arith.constant 0 : index
    %0 = vector.load %arg3[%c0, %c0_0] : memref<28x8xf32, #tpu.memory_space<vmem>>, vector<28x8xf32>
    %c0_1 = arith.constant 0 : index
    %c0_2 = arith.constant 0 : index
    %1 = vector.load %arg4[%c0_1, %c0_2] : memref<28x1xf32, #tpu.memory_space<vmem>>, vector<28x1xf32>
    %c0_3 = arith.constant 0 : index
    %c0_4 = arith.constant 0 : index
    %c0_5 = arith.constant 0 : index
    %2 = vector.load %arg2[%c0_3, %c0_4, %c0_5] : memref<2x8x42xf32, #tpu.memory_space<vmem>>, vector<1x8x42xf32>
    %3 = vector.shape_cast %2 : vector<1x8x42xf32> to vector<8x42xf32>
    %cst = arith.constant dense<0.000000e+00> : vector<28x42xf32>
    %4 = tpu.matmul %0, %3, %cst {dimension_numbers = #tpu.dot_dimension_numbers<[1], [0], [0], [1], [0, 0, 1, 1], [], []>} : vector<28x8xf32>, vector<8x42xf32>, vector<28x42xf32> -> vector<28x42xf32>
    %5 = vector.broadcast %1 : vector<28x1xf32> to vector<28x42xf32>
    %6 = arith.addf %4, %5 : vector<28x42xf32>
    %c0_6 = arith.constant 0 : index
    %c0_7 = arith.constant 0 : index
    %c0_8 = arith.constant 0 : index
    %7 = vector.load %arg5[%c0_6, %c0_7, %c0_8] : memref<2x28x42xf32, #tpu.memory_space<vmem>>, vector<1x28x42xf32>
    %8 = vector.shape_cast %7 : vector<1x28x42xf32> to vector<28x42xf32>
    %9 = vector.shape_cast %6 : vector<28x42xf32> to vector<1x28x42xf32>
    tpu.vector_store %arg5[%c0_6, %c0_7, %c0_8], %9 {strides = array<i32>} : memref<2x28x42xf32, #tpu.memory_space<vmem>>, vector<1x28x42xf32>,
    %c1 = arith.constant 1 : index
    %c0_9 = arith.constant 0 : index
    %c0_10 = arith.constant 0 : index
    %10 = vector.load %arg2[%c1, %c0_9, %c0_10] : memref<2x8x42xf32, #tpu.memory_space<vmem>>, vector<1x8x42xf32>
    %11 = vector.shape_cast %10 : vector<1x8x42xf32> to vector<8x42xf32>
    %cst_11 = arith.constant dense<0.000000e+00> : vector<28x42xf32>
    %12 = tpu.matmul %0, %11, %cst_11 {dimension_numbers = #tpu.dot_dimension_numbers<[1], [0], [0], [1], [0, 0, 1, 1], [], []>} : vector<28x8xf32>, vector<8x42xf32>, vector<28x42xf32> -> vector<28x42xf32>
    %13 = vector.broadcast %1 : vector<28x1xf32> to vector<28x42xf32>
    %14 = arith.addf %12, %13 : vector<28x42xf32>
    %c1_12 = arith.constant 1 : index
    %c0_13 = arith.constant 0 : index
    %c0_14 = arith.constant 0 : index
    %15 = vector.load %arg5[%c1_12, %c0_13, %c0_14] : memref<2x28x42xf32, #tpu.memory_space<vmem>>, vector<1x28x42xf32>
    %16 = vector.shape_cast %15 : vector<1x28x42xf32> to vector<28x42xf32>
    %17 = vector.shape_cast %14 : vector<28x42xf32> to vector<1x28x42xf32>
    tpu.vector_store %arg5[%c1_12, %c0_13, %c0_14], %17 {strides = array<i32>} : memref<2x28x42xf32, #tpu.memory_space<vmem>>, vector<1x28x42xf32>,
    return
  }
  func.func @transform_0(%arg0: i32, %arg1: i32) -> (i32, i32, i32) {
    %c0_i32 = arith.constant 0 : i32
    %c0_i32_0 = arith.constant 0 : i32
    return %arg0, %c0_i32, %arg1 : i32, i32, i32
  }
  func.func @transform_1(%arg0: i32, %arg1: i32) -> (i32, i32) {
    %c0_i32 = arith.constant 0 : i32
    %c0_i32_0 = arith.constant 0 : i32
    %c0_i32_1 = arith.constant 0 : i32
    return %c0_i32, %c0_i32_0 : i32, i32
  }
  func.func @transform_2(%arg0: i32, %arg1: i32) -> (i32, i32) {
    %c0_i32 = arith.constant 0 : i32
    %c0_i32_0 = arith.constant 0 : i32
    %c0_i32_1 = arith.constant 0 : i32
    return %c0_i32, %c0_i32_0 : i32, i32
  }
  func.func @transform_3(%arg0: i32, %arg1: i32) -> (i32, i32, i32) {
    %c0_i32 = arith.constant 0 : i32
    %c0_i32_0 = arith.constant 0 : i32
    return %arg0, %c0_i32, %arg1 : i32, i32, i32
  }
}

</mosaic_0001>

<llo_original>
// kernel: tpu_custom_call.1
$region0: #{tpu_custom_call.1}
  #allocation0 [shape = 'u32[]', space=smem, size = 0x4, offset = 0x4, fixed_abs, tag = 'smem constant byte address 0x4 - core index']
  #allocation1 [shape = 'u32[144,128]{1,0:T(1,128)}', space=vmem, size = 0x12000, scoped, tag = 'internal scratch']
  %s0 = inlined_call_operand.vmem [shape: f32[4,8,42], index: 0, kind: input, shape index: {}]
  %s1 = inlined_call_operand.vmem [shape: f32[28,8], index: 1, kind: input, shape index: {}]
  %s2 = inlined_call_operand.vmem [shape: f32[28,1], index: 2, kind: input, shape index: {}]
  %s3 = inlined_call_operand.vmem [shape: f32[4,28,42], index: 3, kind: output, shape index: {}]
  %s4 = sld [smem:[#allocation0]]
  $region45: #{tpu_custom_call.1} parent=0
    _
  %s6 = ssub.s32 1, %s4
  %s7 = scalar_select 0, %s6, %s4
  loop: start=0, step=1, limit=4
  $region2: #{tpu_custom_call.1} parent=0 // loop_pre_header
    _
  $region3: #{tpu_custom_call.1} parent=0 // loop_header
    %s9 = sphi 0, %s13
    %p10 = scmp.ge.s32.totalorder %s9, 4
    %s16 = sphi 0, %s28
    %s17 = sphi 0, %s24
    %s18 = sphi 0, %s16
    %s19 = sphi 0, %s17
    %s20 = sphi 0, %s18
    %s21 = sphi 0, %s19
    %s33 = sphi 0, %s35
    %s36 = sphi 0, %s33
    %s37 = sphi 0, %s36
    %s53 = sphi 0, %s37
    %s57 = sphi 0, %s57
    %s59 = sphi 0, %s57
    %s60 = sphi 0, %s59
    %s74 = sphi 0, %s60
    %s78 = sphi 0, %s78
    %s80 = sphi 0, %s78
    %s81 = sphi 0, %s80
    %s95 = sphi 0, %s81
    %s103 = sphi 0, %s105
    %s106 = sphi 0, %s103
    %s107 = sphi 0, %s106
    %s123 = sphi 0, %s107
  $region4: #{tpu_custom_call.1} parent=0 // loop_header_branch
    %12 = sbr.rel (%p10) target = $region8
  $region5: #{tpu_custom_call.1} parent=0 // loop_body
    %s14 = ssub.s32 %s9, 1
    %s15 = ssub.s32 %s9, 2
    %s22 = sadd.s32 1, %s17
    %p23 = scmp.ge.s32.totalorder %s22, 1
    %s24 = scalar_select %p23, 0, %s22
    %s25 = sadd.s32 1, %s16
    %s26 = scalar_select %p23, %s25, %s16
    %p27 = scmp.ge.s32.totalorder %s26, 2
    %s28 = scalar_select %p27, 0, %s26
    %s29 = ssub.s32 %s16, %s28
    %s30 = ssub.s32 %s17, %s24
    %s31 = sor.u32 %s29, %s30
    %p32 = scmp.eq.s32.totalorder %s31, 0
    %s34 = sadd.s32 %s33, 1
    %s35 = scalar_select %p32, %s33, %s34
    %p38 = pneg %p32
    %p39 = scmp.eq.s32.totalorder %s9, 1
    %p40 = por %p38, %p39
    %p41 = scmp.ne.s32.totalorder %s33, %s36
    %p42 = scmp.eq.s32.totalorder %s9, 0
    %p43 = por %p41, %p42
    %p44 = scmp.ne.s32.totalorder %s33, %s36
    %p45 = scmp.eq.s32.totalorder %s14, 1
    %p46 = por %p44, %p45
    %p47 = scmp.ne.s32.totalorder %s36, %s37
    %p48 = scmp.eq.s32.totalorder %s14, 0
    %p49 = por %p47, %p48
    %p50 = scmp.ne.s32.totalorder %s36, %s37
    %p51 = scmp.eq.s32.totalorder %s15, 1
    %p52 = por %p50, %p51
    %p54 = scmp.ne.s32.totalorder %s37, %s53
    %p55 = scmp.eq.s32.totalorder %s15, 0
    %p56 = por %p54, %p55
    %s58 = sadd.s32 %s57, 1
    %p61 = scmp.eq.s32.totalorder %s9, 1
    %p62 = scmp.ne.s32.totalorder %s57, %s59
    %p63 = scmp.eq.s32.totalorder %s9, 0
    %p64 = por %p62, %p63
    %p65 = scmp.ne.s32.totalorder %s57, %s59
    %p66 = scmp.eq.s32.totalorder %s14, 1
    %p67 = por %p65, %p66
    %p68 = scmp.ne.s32.totalorder %s59, %s60
    %p69 = scmp.eq.s32.totalorder %s14, 0
    %p70 = por %p68, %p69
    %p71 = scmp.ne.s32.totalorder %s59, %s60
    %p72 = scmp.eq.s32.totalorder %s15, 1
    %p73 = por %p71, %p72
    %p75 = scmp.ne.s32.totalorder %s60, %s74
    %p76 = scmp.eq.s32.totalorder %s15, 0
    %p77 = por %p75, %p76
    %s79 = sadd.s32 %s78, 1
    %p82 = scmp.eq.s32.totalorder %s9, 1
    %p83 = scmp.ne.s32.totalorder %s78, %s80
    %p84 = scmp.eq.s32.totalorder %s9, 0
    %p85 = por %p83, %p84
    %p86 = scmp.ne.s32.totalorder %s78, %s80
    %p87 = scmp.eq.s32.totalorder %s14, 1
    %p88 = por %p86, %p87
    %p89 = scmp.ne.s32.totalorder %s80, %s81
    %p90 = scmp.eq.s32.totalorder %s14, 0
    %p91 = por %p89, %p90
    %p92 = scmp.ne.s32.totalorder %s80, %s81
    %p93 = scmp.eq.s32.totalorder %s15, 1
    %p94 = por %p92, %p93
    %p96 = scmp.ne.s32.totalorder %s81, %s95
    %p97 = scmp.eq.s32.totalorder %s15, 0
    %p98 = por %p96, %p97
    %s99 = ssub.s32 %s16, %s28
    %s100 = ssub.s32 %s17, %s24
    %s101 = sor.u32 %s99, %s100
    %p102 = scmp.eq.s32.totalorder %s101, 0
    %s104 = sadd.s32 %s103, 1
    %s105 = scalar_select %p102, %s103, %s104
    %p108 = pneg %p102
    %p109 = scmp.eq.s32.totalorder %s9, 1
    %p110 = por %p108, %p109
    %p111 = scmp.ne.s32.totalorder %s103, %s106
    %p112 = scmp.eq.s32.totalorder %s9, 0
    %p113 = por %p111, %p112
    %p114 = scmp.ne.s32.totalorder %s103, %s106
    %p115 = scmp.eq.s32.totalorder %s14, 1
    %p116 = por %p114, %p115
    %p117 = scmp.ne.s32.totalorder %s106, %s107
    %p118 = scmp.eq.s32.totalorder %s14, 0
    %p119 = por %p117, %p118
    %p120 = scmp.ne.s32.totalorder %s106, %s107
    %p121 = scmp.eq.s32.totalorder %s15, 1
    %p122 = por %p120, %p121
    %p124 = scmp.ne.s32.totalorder %s107, %s123
    %p125 = scmp.eq.s32.totalorder %s15, 0
    %p126 = por %p124, %p125
    %p127 = scmp.le.s32.totalorder 1, %s9
    %p128 = scmp.lt.s32.totalorder %s9, 3
    %p129 = pnand %p127, %p128
    %p130 = pneg %p129
    // Predicated region
    $region9: #{tpu_custom_call.1} parent=5 // pred_check
      _
    $region10: #{tpu_custom_call.1} parent=5 // pred_check_branch
      %132 = sbr.rel (%p129) target = $region12
    $region11: #{tpu_custom_call.1} parent=5 // pred_region
      %s133 = ssub.s32 %s9, 1
      // Predicated region
      $region13: #{tpu_custom_call.1} parent=11 // pred_check
        %p134 = pneg %p70
      $region14: #{tpu_custom_call.1} parent=11 // pred_check_branch
        %136 = sbr.rel (%p134) target = $region16
      $region15: #{tpu_custom_call.1} parent=11 // pred_region
        _
      $region16: #{tpu_custom_call.1} parent=11 // pred_fallthru
        _
      // Predicated region
      $region17: #{tpu_custom_call.1} parent=11 // pred_check
        %p137 = pneg %p91
      $region18: #{tpu_custom_call.1} parent=11 // pred_check_branch
        %139 = sbr.rel (%p137) target = $region20
      $region19: #{tpu_custom_call.1} parent=11 // pred_region
        _
      $region20: #{tpu_custom_call.1} parent=11 // pred_fallthru
        _
    $region12: #{tpu_custom_call.1} parent=5 // pred_fallthru
      _
    %p140 = scmp.lt.s32.totalorder %s9, 2
    // Predicated region
    $region21: #{tpu_custom_call.1} parent=5 // pred_check
      %p141 = pneg %p140
    $region22: #{tpu_custom_call.1} parent=5 // pred_check_branch
      %143 = sbr.rel (%p141) target = $region24
    $region23: #{tpu_custom_call.1} parent=5 // pred_region
      // Predicated region
      $region25: #{tpu_custom_call.1} parent=23 // pred_check
        %p144 = pneg %p43
      $region26: #{tpu_custom_call.1} parent=23 // pred_check_branch
        %146 = sbr.rel (%p144) target = $region28
      $region27: #{tpu_custom_call.1} parent=23 // pred_region
        %s147 = smul.u32 2, %s16
        %p148 = scmp.lt.s32.totalorder %s147, 3
        %s149 = scalar_select %p148, %s147, 3
        %p150 = scmp.lt.s32.totalorder %s17, 0
        %s151 = scalar_select %p150, %s17, 0
        %s152 = sadd.s32 %s151, %s149
        %s153 = smul.addr %s152, 8
        %s154 = scalar_lea.vmem %s0, %s153
        %s155 = smul.u32 2, %s16
      $region28: #{tpu_custom_call.1} parent=23 // pred_fallthru
        _
    $region24: #{tpu_custom_call.1} parent=5 // pred_fallthru
      _
    %p156 = scmp.le.s32.totalorder 1, %s9
    %p157 = scmp.lt.s32.totalorder %s9, 3
    %p158 = pnand %p156, %p157
    %p159 = pneg %p158
    // Predicated region
    $region29: #{tpu_custom_call.1} parent=5 // pred_check
      _
    $region30: #{tpu_custom_call.1} parent=5 // pred_check_branch
      %161 = sbr.rel (%p158) target = $region32
    $region31: #{tpu_custom_call.1} parent=5 // pred_region
      %s162 = ssub.s32 %s9, 1
      %s163 = smul.u32 2, %s18
      %p164 = scmp.lt.s32.totalorder %s163, 3
      %s165 = scalar_select %p164, %s163, 3
      %p166 = scmp.lt.s32.totalorder %s19, 0
      %s167 = scalar_select %p166, %s19, 0
      %s168 = sadd.s32 %s167, %s165
      %s169 = smul.addr %s168, 8
      %s170 = scalar_lea.vmem %s0, %s169
      %p171 = pneg %p49
      %p172 = pneg %p46
      %p173 = pneg %p70
      %p174 = pneg %p67
      %p175 = pneg %p91
      %p176 = pneg %p88
      %p177 = pneg %p119
      %p178 = pneg %p116
      %s179 = smul.u32 2, %s18
      %p180 = scmp.lt.s32.totalorder %s179, 3
      %s181 = scalar_select %p180, %s179, 3
      %p182 = scmp.lt.s32.totalorder %s19, 0
      %s183 = scalar_select %p182, %s19, 0
      %s184 = smul.addr %s181, 4
      %s185 = sadd.s32 %s183, %s184
      %s186 = smul.addr %s185, 8
      %s187 = scalar_lea.vmem %s3, %s186
      %s188 = smul.u32 2, %s18
      %p189 = scmp.lt.s32.totalorder %s188, 3
      %s190 = scalar_select %p189, %s188, 3
      %p191 = scmp.lt.s32.totalorder %s19, 0
      %s192 = scalar_select %p191, %s19, 0
      %s193 = sadd.s32 %s192, %s190
      %s194 = smul.addr %s193, 8
      %s195 = scalar_lea.vmem %s0, %s194
      %s196 = smul.u32 2, %s18
      %s197 = smul.u32 2, %s18
      %p198 = scmp.lt.s32.totalorder %s197, 3
      %s199 = scalar_select %p198, %s197, 3
      %p200 = scmp.lt.s32.totalorder %s19, 0
      %s201 = scalar_select %p200, %s19, 0
      %s202 = smul.addr %s199, 4
      %s203 = sadd.s32 %s201, %s202
      %s204 = smul.addr %s203, 8
      %s205 = scalar_lea.vmem %s3, %s204
      %s206 = smul.u32 2, %s18
      %v207 = vld [vmem:[%s1] sm:$0xff]
      %v208 = vld [vmem:[%s1 + $0x8] sm:$0xff]
      %v209 = vld [vmem:[%s1 + $0x10] sm:$0xff]
      %v210 = vld [vmem:[%s1 + $0x18] sm:$0xf]
      %v211 = vld [vmem:[%s2] sm:$0xff]
      %v212 = vld [vmem:[%s2 + $0x8] sm:$0xff]
      %v213 = vld [vmem:[%s2 + $0x10] sm:$0xff]
      %v214 = vld [vmem:[%s2 + $0x18] sm:$0xf]
      %v215 = vld [vmem:[%s195] sm:$0xff]
      %217 = vset.pattern.permute.xlu0 0
      %218 = vperm.xlu0 %217, %v211
      %v219 = vpop.permute.xlu0 %218
      %222 = vset.pattern.permute.xlu0 0
      %223 = vperm.xlu0 %222, %v212
      %v224 = vpop.permute.xlu0 %223
      %227 = vset.pattern.permute.xlu0 0
      %228 = vperm.xlu0 %227, %v213
      %v229 = vpop.permute.xlu0 %228
      %232 = vset.pattern.permute.xlu0 0
      %233 = vperm.xlu0 %232, %v214
      %v234 = vpop.permute.xlu0 %233
      %vm236 = vcmask 64512
      %v238 = vsel %vm236, %v207, 0
      %v241 = vsel %vm236, %v208, 0
      %v244 = vsel %vm236, %v209, 0
      %v247 = vsel %vm236, %v210, 0
      %249 = vmatprep.subr.mxu0 0.0
      %250 = vmatpush1.msra.mxu0 %v215
      %251 = vmatprep.subr.mxu0 0.0
      %252 = vmatpush1.msra.mxu0 0.0
      %253 = vmatprep.subr.mxu0 0.0
      %254 = vmatpush1.msra.mxu0 0.0
      %255 = vmatprep.subr.mxu0 0.0
      %256 = vmatpush1.msra.mxu0 0.0
      %257 = vmatprep.subr.mxu0 0.0
      %258 = vmatpush1.msra.mxu0 0.0
      %259 = vmatprep.subr.mxu0 0.0
      %260 = vmatpush1.msra.mxu0 0.0
      %261 = vmatprep.subr.mxu0 0.0
      %262 = vmatpush1.msra.mxu0 0.0
      %263 = vmatprep.subr.mxu0 0.0
      %264 = vmatpush1.msra.mxu0 0.0
      %265 = vmatprep.subr.mxu0 0.0
      %266 = vmatpush1.msra.mxu0 0.0
      %267 = vmatprep.subr.mxu0 0.0
      %268 = vmatpush1.msra.mxu0 0.0
      %269 = vmatprep.subr.mxu0 0.0
      %270 = vmatpush1.msra.mxu0 0.0
      %271 = vmatprep.subr.mxu0 0.0
      %272 = vmatpush1.msra.mxu0 0.0
      %273 = vmatprep.subr.mxu0 0.0
      %274 = vmatpush1.msra.mxu0 0.0
      %275 = vmatprep.subr.mxu0 0.0
      %276 = vmatpush1.msra.mxu0 0.0
      %277 = vmatprep.subr.mxu0 0.0
      %278 = vmatpush1.msra.mxu0 0.0
      %279 = vmatprep.subr.mxu0 0.0
      %280 = vmatpush1.msra.mxu0 0.0
      %281 = vmatprep.subr.mxu0 0.0
      %282 = vmatpush1.msra.mxu0 0.0
      %283 = vmatprep.subr.mxu0 0.0
      %284 = vmatpush1.msra.mxu0 0.0
      %285 = vmatprep.subr.mxu0 0.0
      %286 = vmatpush1.msra.mxu0 0.0
      %287 = vmatprep.subr.mxu0 0.0
      %288 = vmatpush1.msra.mxu0 0.0
      %289 = vmatprep.subr.mxu0 0.0
      %290 = vmatpush1.msra.mxu0 0.0
      %291 = vmatprep.subr.mxu0 0.0
      %292 = vmatpush1.msra.mxu0 0.0
      %293 = vmatprep.subr.mxu0 0.0
      %294 = vmatpush1.msra.mxu0 0.0
      %295 = vmatprep.subr.mxu0 0.0
      %296 = vmatpush1.msra.mxu0 0.0
      %297 = vmatprep.subr.mxu0 0.0
      %298 = vmatpush1.msra.mxu0 0.0
      %299 = vmatprep.subr.mxu0 0.0
      %300 = vmatpush1.msra.mxu0 0.0
      %301 = vmatprep.subr.mxu0 0.0
      %302 = vmatpush1.msra.mxu0 0.0
      %303 = vmatprep.subr.mxu0 0.0
      %304 = vmatpush1.msra.mxu0 0.0
      %305 = vmatprep.subr.mxu0 0.0
      %306 = vmatpush1.msra.mxu0 0.0
      %307 = vmatprep.subr.mxu0 0.0
      %308 = vmatpush1.msra.mxu0 0.0
      %309 = vmatprep.subr.mxu0 0.0
      %310 = vmatpush1.msra.mxu0 0.0
      %311 = vmatprep.subr.mxu0 0.0
      %312 = vmatpush1.msra.mxu0 0.0
      %313 = vmatprep.mubr.f32.mxu0 0.0
      %314 = vmatmul.mubr.f32.gmra.mrb[0].mxu0 %v238
      %v315 = vpop.f32.mrb[0].mxu0
      %v316 = vadd.f32 %v219, %v315
      %v317 = vpop.f32.mrb[0].mxu0
      %318 = vmatprep.mubr.f32.mxu0 0.0
      %319 = vmatmul.mubr.f32.gmra.mrb[0].mxu0 %v241
      %v320 = vpop.f32.mrb[0].mxu0
      %v321 = vadd.f32 %v224, %v320
      %v322 = vpop.f32.mrb[0].mxu0
      %323 = vmatprep.mubr.f32.mxu0 0.0
      %324 = vmatmul.mubr.f32.gmra.mrb[0].mxu0 %v244
      %v325 = vpop.f32.mrb[0].mxu0
      %v326 = vadd.f32 %v229, %v325
      %v327 = vpop.f32.mrb[0].mxu0
      %328 = vmatprep.mubr.f32.mxu0 0.0
      %329 = vmatmul.mubr.f32.gmra.mrb[0].mxu0 %v247
      %v330 = vpop.f32.mrb[0].mxu0
      %v331 = vadd.f32 %v234, %v330
      %v332 = vpop.f32.mrb[0].mxu0
      %333 = vdwg.mxu0
      %vm334 = vcmask 343040
      %335 = vst.msk [vmem:[%s205] sm:$0xff] %vm334, %v316
      %336 = vst.msk [vmem:[%s205 + $0x8] sm:$0xff] %vm334, %v321
      %337 = vst.msk [vmem:[%s205 + $0x10] sm:$0xff] %vm334, %v326
      %vm338 = vcmask 338944
      %339 = vst.msk [vmem:[%s205 + $0x18] sm:$0xf] %vm338, %v331
      %s340 = scalar_lea.vmem %s195, 8
      %v341 = vld [vmem:[%s340] sm:$0xff]
      %342 = vmatprep.subr.mxu0 0.0
      %343 = vmatpush1.msra.mxu0 %v341
      %344 = vmatprep.subr.mxu0 0.0
      %345 = vmatpush1.msra.mxu0 0.0
      %346 = vmatprep.subr.mxu0 0.0
      %347 = vmatpush1.msra.mxu0 0.0
      %348 = vmatprep.subr.mxu0 0.0
      %349 = vmatpush1.msra.mxu0 0.0
      %350 = vmatprep.subr.mxu0 0.0
      %351 = vmatpush1.msra.mxu0 0.0
      %352 = vmatprep.subr.mxu0 0.0
      %353 = vmatpush1.msra.mxu0 0.0
      %354 = vmatprep.subr.mxu0 0.0
      %355 = vmatpush1.msra.mxu0 0.0
      %356 = vmatprep.subr.mxu0 0.0
      %357 = vmatpush1.msra.mxu0 0.0
      %358 = vmatprep.subr.mxu0 0.0
      %359 = vmatpush1.msra.mxu0 0.0
      %360 = vmatprep.subr.mxu0 0.0
      %361 = vmatpush1.msra.mxu0 0.0
      %362 = vmatprep.subr.mxu0 0.0
      %363 = vmatpush1.msra.mxu0 0.0
      %364 = vmatprep.subr.mxu0 0.0
      %365 = vmatpush1.msra.mxu0 0.0
      %366 = vmatprep.subr.mxu0 0.0
      %367 = vmatpush1.msra.mxu0 0.0
      %368 = vmatprep.subr.mxu0 0.0
      %369 = vmatpush1.msra.mxu0 0.0
      %370 = vmatprep.subr.mxu0 0.0
      %371 = vmatpush1.msra.mxu0 0.0
      %372 = vmatprep.subr.mxu0 0.0
      %373 = vmatpush1.msra.mxu0 0.0
      %374 = vmatprep.subr.mxu0 0.0
      %375 = vmatpush1.msra.mxu0 0.0
      %376 = vmatprep.subr.mxu0 0.0
      %377 = vmatpush1.msra.mxu0 0.0
      %378 = vmatprep.subr.mxu0 0.0
      %379 = vmatpush1.msra.mxu0 0.0
      %380 = vmatprep.subr.mxu0 0.0
      %381 = vmatpush1.msra.mxu0 0.0
      %382 = vmatprep.subr.mxu0 0.0
      %383 = vmatpush1.msra.mxu0 0.0
      %384 = vmatprep.subr.mxu0 0.0
      %385 = vmatpush1.msra.mxu0 0.0
      %386 = vmatprep.subr.mxu0 0.0
      %387 = vmatpush1.msra.mxu0 0.0
      %388 = vmatprep.subr.mxu0 0.0
      %389 = vmatpush1.msra.mxu0 0.0
      %390 = vmatprep.subr.mxu0 0.0
      %391 = vmatpush1.msra.mxu0 0.0
      %392 = vmatprep.subr.mxu0 0.0
      %393 = vmatpush1.msra.mxu0 0.0
      %394 = vmatprep.subr.mxu0 0.0
      %395 = vmatpush1.msra.mxu0 0.0
      %396 = vmatprep.subr.mxu0 0.0
      %397 = vmatpush1.msra.mxu0 0.0
      %398 = vmatprep.subr.mxu0 0.0
      %399 = vmatpush1.msra.mxu0 0.0
      %400 = vmatprep.subr.mxu0 0.0
      %401 = vmatpush1.msra.mxu0 0.0
      %402 = vmatprep.subr.mxu0 0.0
      %403 = vmatpush1.msra.mxu0 0.0
      %404 = vmatprep.subr.mxu0 0.0
      %405 = vmatpush1.msra.mxu0 0.0
      %406 = vmatprep.mubr.f32.mxu0 0.0
      %407 = vmatmul.mubr.f32.gmra.mrb[0].mxu0 %v238
      %v408 = vpop.f32.mrb[0].mxu0
      %v409 = vadd.f32 %v219, %v408
      %v410 = vpop.f32.mrb[0].mxu0
      %411 = vmatprep.mubr.f32.mxu0 0.0
      %412 = vmatmul.mubr.f32.gmra.mrb[0].mxu0 %v241
      %v413 = vpop.f32.mrb[0].mxu0
      %v414 = vadd.f32 %v224, %v413
      %v415 = vpop.f32.mrb[0].mxu0
      %416 = vmatprep.mubr.f32.mxu0 0.0
      %417 = vmatmul.mubr.f32.gmra.mrb[0].mxu0 %v244
      %v418 = vpop.f32.mrb[0].mxu0
      %v419 = vadd.f32 %v229, %v418
      %v420 = vpop.f32.mrb[0].mxu0
      %421 = vmatprep.mubr.f32.mxu0 0.0
      %422 = vmatmul.mubr.f32.gmra.mrb[0].mxu0 %v247
      %v423 = vpop.f32.mrb[0].mxu0
      %v424 = vadd.f32 %v234, %v423
      %v425 = vpop.f32.mrb[0].mxu0
      %426 = vdwg.mxu0
      %s427 = scalar_lea.vmem %s205, 32
      %428 = vst.msk [vmem:[%s427] sm:$0xff] %vm334, %v409
      %429 = vst.msk [vmem:[%s427 + $0x8] sm:$0xff] %vm334, %v414
      %430 = vst.msk [vmem:[%s427 + $0x10] sm:$0xff] %vm334, %v419
      %431 = vst.msk [vmem:[%s427 + $0x18] sm:$0xf] %vm338, %v424
      %s432 = smul.u32 2, %s18
      %p433 = scmp.lt.s32.totalorder %s432, 3
      %s434 = scalar_select %p433, %s432, 3
      %p435 = scmp.lt.s32.totalorder %s19, 0
      %s436 = scalar_select %p435, %s19, 0
      %s437 = smul.addr %s434, 4
      %s438 = sadd.s32 %s436, %s437
      %s439 = smul.addr %s438, 8
      %s440 = scalar_lea.vmem %s3, %s439
      // Predicated region
      $region33: #{tpu_custom_call.1} parent=31 // pred_check
        %p441 = pneg %p116
      $region34: #{tpu_custom_call.1} parent=31 // pred_check_branch
        %443 = sbr.rel (%p441) target = $region36
      $region35: #{tpu_custom_call.1} parent=31 // pred_region
        %s444 = smul.u32 2, %s18
      $region36: #{tpu_custom_call.1} parent=31 // pred_fallthru
        _
    $region32: #{tpu_custom_call.1} parent=5 // pred_fallthru
      _
    %p445 = scmp.le.s32.totalorder 2, %s9
    // Predicated region
    $region37: #{tpu_custom_call.1} parent=5 // pred_check
      %p446 = pneg %p445
    $region38: #{tpu_custom_call.1} parent=5 // pred_check_branch
      %448 = sbr.rel (%p446) target = $region40
    $region39: #{tpu_custom_call.1} parent=5 // pred_region
      %s449 = ssub.s32 %s9, 2
      // Predicated region
      $region41: #{tpu_custom_call.1} parent=39 // pred_check
        %p450 = pneg %p122
      $region42: #{tpu_custom_call.1} parent=39 // pred_check_branch
        %452 = sbr.rel (%p450) target = $region44
      $region43: #{tpu_custom_call.1} parent=39 // pred_region
        %s453 = smul.u32 2, %s20
        %p454 = scmp.lt.s32.totalorder %s453, 3
        %s455 = scalar_select %p454, %s453, 3
        %p456 = scmp.lt.s32.totalorder %s21, 0
        %s457 = scalar_select %p456, %s21, 0
        %s458 = smul.addr %s455, 4
        %s459 = sadd.s32 %s457, %s458
        %s460 = smul.addr %s459, 8
        %s461 = scalar_lea.vmem %s3, %s460
      $region44: #{tpu_custom_call.1} parent=39 // pred_fallthru
        _
    $region40: #{tpu_custom_call.1} parent=5 // pred_fallthru
      _
  $region6: #{tpu_custom_call.1} parent=0 // loop_footer
    %s13 = sadd.s32 1, %s9
  $region7: #{tpu_custom_call.1} parent=0 // loop_footer_branch
    %8 = sbr.rel target = $region3
  $region8: #{tpu_custom_call.1} parent=0 // loop_exit
    _

</llo_original>
